<compile_context>
chip_gen: v5e
topology: v5e:2x2
jax: 0.10.0
libtpu: 0.0.40
codegen_flags: <defaults>
</compile_context>

<pallas_src>
import functools
import math

import jax
import jax.numpy as jnp
from jax import lax
from jax.experimental import pallas as pl
from jax.experimental.pallas import tpu as pltpu

# ----------------------------- configuration ---------------------------------
INPUT_DIM = 32
OUTPUT_DIM = 16
NUM_GRIDS = 8
GRID_MIN = -2.0
GRID_MAX = 2.0
LN_EPS = 1e-5
MAX_BATCH_TILE = 2048  # rows per grid step (8-aligned)


def _round_up(n, m):
    return ((n + m - 1) // m) * m


# ------------------------------ Pallas kernel --------------------------------
def fastkan_kernel(x_ref, gamma_ref, shift_ref, w_ref, out_ref, *,
                   eps, num_grids, step_scaled):
    # x_ref:     (TB, D)     f32   input tile
    # gamma_ref: (1, D)      f32   LayerNorm weight / denom (pre-scaled)
    # shift_ref: (1, D)      f32   (LayerNorm bias - grid_min) / denom (pre-scaled)
    # w_ref:     (O, G*D)    bf16  spline weight, g-major columns: col g*D+d = W[:, d*G+g]
    # out_ref:   (O, TB)     f32   transposed output tile (lane-dense along batch)
    x = x_ref[...].astype(jnp.float32)

    # LayerNorm (biased variance, eps inside rsqrt); 1/denom and -grid_min/denom are
    # folded into gamma/shift, so z = (layernorm(x) - grid_min) / denom.
    mean = jnp.mean(x, axis=-1, keepdims=True)
    var = jnp.mean((x - mean) ** 2, axis=-1, keepdims=True)
    rstd = lax.rsqrt(var + eps)                       # (TB, 1)
    z = (x - mean) * (gamma_ref[...] * rstd) + shift_ref[...]   # (TB, D)

    # Flip to (D, TB) so the batch rides the lane axis for all remaining work.
    z = z.T                                           # (D, TB), in-kernel XLU transpose

    # Uniform-grid RBF recurrence: centers in z-space are at g*s (s = spacing/denom).
    #   b_g     = exp(-(z - g*s)^2)
    #   b_0     = exp(-z^2),  u = exp(2*s*z)
    #   b_{g+1} = b_g * u * exp(-(2g+1)*s^2)
    # -> 2 EUP exps per element instead of G; multiplies go to slack VPU slots.
    b = jnp.exp(-(z * z))                              # (D, TB)
    u = jnp.exp((2.0 * step_scaled) * z)               # (D, TB)
    blocks = [b]
    for g in range(num_grids - 1):
        k_g = math.exp(-(2 * g + 1) * step_scaled * step_scaled)
        b = b * (u * k_g)
        blocks.append(b)
    # Sublane-stack the per-center blocks: row g*D + d of basis = b_g at feature d.
    basis = jnp.concatenate(blocks, axis=0).astype(jnp.bfloat16)   # (G*D, TB)

    # Single (O, G*D) x (G*D, TB) MXU contraction, bf16 in / f32 accumulate.
    out_ref[...] = jnp.dot(
        w_ref[...], basis, preferred_element_type=jnp.float32
    ).astype(out_ref.dtype)


# ------------------------------- wrapper --------------------------------------
def fastkan_layer(x, ln_gamma, ln_beta, spline_weight, *,
                  grid_min=GRID_MIN, grid_max=GRID_MAX,
                  denominator=None, eps=LN_EPS):
    """x: (B, D) f32; ln_gamma/ln_beta: (D,); spline_weight: (O, D*G) torch layout."""
    B, D = x.shape
    O, DG = spline_weight.shape
    G = DG // D
    assert DG == D * G

    spacing = (grid_max - grid_min) / (G - 1)
    denom = denominator if denominator is not None else spacing
    inv_denom = 1.0 / denom
    step_scaled = spacing * inv_denom   # == 1.0 for the module defaults

    # Fold 1/denom and the first-center offset into the LayerNorm affine params.
    gamma2d = (ln_gamma * inv_denom).reshape(1, D).astype(jnp.float32)
    shift2d = ((ln_beta - grid_min) * inv_denom).reshape(1, D).astype(jnp.float32)

    # Reorder spline weight to g-major columns and cast to bf16 for the MXU:
    # torch flattens the basis as index d*G + g, the kernel packs it as g*D + d.
    w_k = (spline_weight.reshape(O, D, G)
           .transpose(0, 2, 1)
           .reshape(O, G * D)
           .astype(jnp.bfloat16))

    # Batch tiling: 8-aligned tile; guarantee >=2 grid steps when B > 8 so both
    # v7x TensorCores get work.  No padding: ragged last block is masked by Pallas.
    TB = min(MAX_BATCH_TILE, _round_up(B, 8))
    if B > 8:
        TB = min(TB, max(8, _round_up(pl.cdiv(B, 2), 8)))
    num_blocks = pl.cdiv(B, TB)

    kernel = functools.partial(
        fastkan_kernel, eps=eps, num_grids=G, step_scaled=step_scaled
    )

    out_t = pl.pallas_call(
        kernel,
        out_shape=jax.ShapeDtypeStruct((O, B), jnp.float32),
        grid=(num_blocks,),
        in_specs=[
            pl.BlockSpec((TB, D), lambda i: (i, 0)),       # x tile
            pl.BlockSpec((1, D), lambda i: (0, 0)),        # gamma/denom (resident)
            pl.BlockSpec((1, D), lambda i: (0, 0)),        # (beta-grid_min)/denom (resident)
            pl.BlockSpec((O, G * D), lambda i: (0, 0)),    # reordered bf16 weight (resident)
        ],
        out_specs=pl.BlockSpec((O, TB), lambda i: (0, i)), # transposed, lane-dense output
        compiler_params=pltpu.CompilerParams(
            dimension_semantics=("parallel",),
            vmem_limit_bytes=32 * 1024 * 1024,
        ),
    )(x, gamma2d, shift2d, w_k)

    # Small (O, B) -> (B, O) flip back to the module's output layout.
    return out_t.T


# ----------------------------- pure-JAX reference ------------------------------
def fastkan_ref(x, ln_gamma, ln_beta, grid, spline_weight):
    denom = (GRID_MAX - GRID_MIN) / (NUM_GRIDS - 1)
    mean = jnp.mean(x, axis=-1, keepdims=True)
    var = jnp.mean((x - mean) ** 2, axis=-1, keepdims=True)
    x_ln = (x - mean) / jnp.sqrt(var + LN_EPS) * ln_gamma + ln_beta
    sb = jnp.exp(-(((x_ln[..., None] - grid) / denom) ** 2))        # (B, D, G)
    sb_flat = sb.reshape(*sb.shape[:-2], -1)                        # (B, D*G), d-major
    return sb_flat @ spline_weight.T                                # (B, O)


# ---------------------------------- main ---------------------------------------
if __name__ == "__main__":
    key = jax.random.PRNGKey(0)
    kx, kw = jax.random.split(key)

    B = 8
    x = jax.random.normal(kx, (B, INPUT_DIM), dtype=jnp.float32)

    # Deterministic parameter init matching the module defaults:
    # nn.LayerNorm: weight=1, bias=0.
    ln_gamma = jnp.ones((INPUT_DIM,), jnp.float32)
    ln_beta = jnp.zeros((INPUT_DIM,), jnp.float32)
    # RBF grid buffer: linspace(grid_min, grid_max, num_grids) (used by the reference).
    grid = jnp.linspace(GRID_MIN, GRID_MAX, NUM_GRIDS, dtype=jnp.float32)
    # SplineLinear weight: trunc_normal(std=0.1), shape (out, in) torch layout.
    spline_weight = 0.1 * jax.random.truncated_normal(
        kw, -2.0, 2.0, (OUTPUT_DIM, INPUT_DIM * NUM_GRIDS), dtype=jnp.float32
    )

    out = fastkan_layer(x, ln_gamma, ln_beta, spline_weight)
    out = jax.block_until_ready(out)

    ref = fastkan_ref(x, ln_gamma, ln_beta, grid, spline_weight)
    assert out.shape == (B, OUTPUT_DIM)
    # Tolerance loosened vs. the f32 reference because the MXU operands are bf16
    # (f32 accumulation); structural bugs would show O(1) errors, well above this.
    max_err = float(jnp.max(jnp.abs(out - ref)))
    assert jnp.allclose(out, ref, atol=5e-2, rtol=5e-2), (
        f"mismatch vs reference (max abs err {max_err})"
    )

    print("KERNEL_OK")
</pallas_src>

<mosaic_0001>
module attributes {stable_mosaic.version = 11 : i64} {
  func.func @fastkan_kernel(%arg0: i32, %arg1: memref<8x32xf32, #tpu.memory_space<vmem>>, %arg2: memref<1x32xf32, #tpu.memory_space<vmem>>, %arg3: memref<1x32xf32, #tpu.memory_space<vmem>>, %arg4: memref<16x256xbf16, #tpu.memory_space<vmem>>, %arg5: memref<16x8xf32, #tpu.memory_space<vmem>>) attributes {dimension_semantics = [#tpu.dimension_semantics<parallel>], iteration_bounds = array<i64: 1>, scalar_prefetch = 0 : i64, scratch_operands = 0 : i64, tpu.core_type = #tpu.core_type<tc>, window_params = [{transform_indices = @transform_0, window_bounds = array<i64: 8, 32>}, {pipeline_mode = #tpu.pipeline_mode<synchronous>, transform_indices = @transform_1, window_bounds = array<i64: 1, 32>}, {pipeline_mode = #tpu.pipeline_mode<synchronous>, transform_indices = @transform_2, window_bounds = array<i64: 1, 32>}, {pipeline_mode = #tpu.pipeline_mode<synchronous>, transform_indices = @transform_3, window_bounds = array<i64: 16, 256>}, {transform_indices = @transform_4, window_bounds = array<i64: 16, 8>}]} {
    %c0 = arith.constant 0 : index
    %c0_0 = arith.constant 0 : index
    %0 = vector.load %arg1[%c0, %c0_0] : memref<8x32xf32, #tpu.memory_space<vmem>>, vector<8x32xf32>
    %cst = arith.constant dense<0.000000e+00> : vector<8xf32>
    %1 = vector.multi_reduction <add>, %0, %cst [1] : vector<8x32xf32> to vector<8xf32>
    %2 = vector.shape_cast %1 : vector<8xf32> to vector<8x1xf32>
    %cst_1 = arith.constant 3.200000e+01 : f32
    %3 = vector.broadcast %cst_1 : f32 to vector<8x1xf32>
    %4 = arith.divf %2, %3 : vector<8x1xf32>
    %5 = vector.broadcast %4 : vector<8x1xf32> to vector<8x32xf32>
    %6 = arith.subf %0, %5 : vector<8x32xf32>
    %7 = arith.mulf %6, %6 : vector<8x32xf32>
    %cst_2 = arith.constant dense<0.000000e+00> : vector<8xf32>
    %8 = vector.multi_reduction <add>, %7, %cst_2 [1] : vector<8x32xf32> to vector<8xf32>
    %9 = vector.shape_cast %8 : vector<8xf32> to vector<8x1xf32>
    %cst_3 = arith.constant 3.200000e+01 : f32
    %10 = vector.broadcast %cst_3 : f32 to vector<8x1xf32>
    %11 = arith.divf %9, %10 : vector<8x1xf32>
    %cst_4 = arith.constant 9.99999974E-6 : f32
    %12 = vector.broadcast %cst_4 : f32 to vector<8x1xf32>
    %13 = arith.addf %11, %12 : vector<8x1xf32>
    %14 = math.rsqrt %13 : vector<8x1xf32>
    %15 = vector.broadcast %4 : vector<8x1xf32> to vector<8x32xf32>
    %16 = arith.subf %0, %15 : vector<8x32xf32>
    %c0_5 = arith.constant 0 : index
    %c0_6 = arith.constant 0 : index
    %17 = vector.load %arg2[%c0_5, %c0_6] : memref<1x32xf32, #tpu.memory_space<vmem>>, vector<1x32xf32>
    %18 = vector.broadcast %17 : vector<1x32xf32> to vector<8x32xf32>
    %19 = vector.broadcast %14 : vector<8x1xf32> to vector<8x32xf32>
    %20 = arith.mulf %18, %19 : vector<8x32xf32>
    %21 = arith.mulf %16, %20 : vector<8x32xf32>
    %c0_7 = arith.constant 0 : index
    %c0_8 = arith.constant 0 : index
    %22 = vector.load %arg3[%c0_7, %c0_8] : memref<1x32xf32, #tpu.memory_space<vmem>>, vector<1x32xf32>
    %23 = vector.broadcast %22 : vector<1x32xf32> to vector<8x32xf32>
    %24 = arith.addf %21, %23 : vector<8x32xf32>
    %25 = tpu.transpose %24, [1, 0] : vector<8x32xf32> -> vector<32x8xf32>
    %26 = arith.mulf %25, %25 : vector<32x8xf32>
    %cst_9 = arith.constant 0.000000e+00 : f32
    %27 = vector.broadcast %cst_9 : f32 to vector<32x8xf32>
    %28 = arith.subf %27, %26 : vector<32x8xf32>
    %29 = math.exp %28 : vector<32x8xf32>
    %cst_10 = arith.constant 2.000000e+00 : f32
    %30 = vector.broadcast %cst_10 : f32 to vector<32x8xf32>
    %31 = arith.mulf %30, %25 : vector<32x8xf32>
    %32 = math.exp %31 : vector<32x8xf32>
    %cst_11 = arith.constant 0.36787945 : f32
    %33 = vector.broadcast %cst_11 : f32 to vector<32x8xf32>
    %34 = arith.mulf %32, %33 : vector<32x8xf32>
    %35 = arith.mulf %29, %34 : vector<32x8xf32>
    %cst_12 = arith.constant 0.0497870669 : f32
    %36 = vector.broadcast %cst_12 : f32 to vector<32x8xf32>
    %37 = arith.mulf %32, %36 : vector<32x8xf32>
    %38 = arith.mulf %35, %37 : vector<32x8xf32>
    %cst_13 = arith.constant 0.006737947 : f32
    %39 = vector.broadcast %cst_13 : f32 to vector<32x8xf32>
    %40 = arith.mulf %32, %39 : vector<32x8xf32>
    %41 = arith.mulf %38, %40 : vector<32x8xf32>
    %cst_14 = arith.constant 9.118820e-04 : f32
    %42 = vector.broadcast %cst_14 : f32 to vector<32x8xf32>
    %43 = arith.mulf %32, %42 : vector<32x8xf32>
    %44 = arith.mulf %41, %43 : vector<32x8xf32>
    %cst_15 = arith.constant 1.23409802E-4 : f32
    %45 = vector.broadcast %cst_15 : f32 to vector<32x8xf32>
    %46 = arith.mulf %32, %45 : vector<32x8xf32>
    %47 = arith.mulf %44, %46 : vector<32x8xf32>
    %cst_16 = arith.constant 1.670170e-05 : f32
    %48 = vector.broadcast %cst_16 : f32 to vector<32x8xf32>
    %49 = arith.mulf %32, %48 : vector<32x8xf32>
    %50 = arith.mulf %47, %49 : vector<32x8xf32>
    %cst_17 = arith.constant 2.26032944E-6 : f32
    %51 = vector.broadcast %cst_17 : f32 to vector<32x8xf32>
    %52 = arith.mulf %32, %51 : vector<32x8xf32>
    %53 = arith.mulf %50, %52 : vector<32x8xf32>
    %54 = tpu.concatenate %29, %35, %38, %41, %44, %47, %50, %53 in 0 : vector<32x8xf32>, vector<32x8xf32>, vector<32x8xf32>, vector<32x8xf32>, vector<32x8xf32>, vector<32x8xf32>, vector<32x8xf32>, vector<32x8xf32> -> vector<256x8xf32>
    %55 = arith.truncf %54 : vector<256x8xf32> to vector<256x8xbf16>
    %c0_18 = arith.constant 0 : index
    %c0_19 = arith.constant 0 : index
    %56 = vector.load %arg4[%c0_18, %c0_19] : memref<16x256xbf16, #tpu.memory_space<vmem>>, vector<16x256xbf16>
    %cst_20 = arith.constant dense<0.000000e+00> : vector<16x8xf32>
    %57 = tpu.matmul %56, %55, %cst_20 {dimension_numbers = #tpu.dot_dimension_numbers<[1], [0], [0], [1], [0, 0, 1, 1], [], []>} : vector<16x256xbf16>, vector<256x8xbf16>, vector<16x8xf32> -> vector<16x8xf32>
    %c0_21 = arith.constant 0 : index
    %c0_22 = arith.constant 0 : index
    %58 = vector.load %arg5[%c0_21, %c0_22] : memref<16x8xf32, #tpu.memory_space<vmem>>, vector<16x8xf32>
    tpu.vector_store %arg5[%c0_21, %c0_22], %57 {strides = array<i32>} : memref<16x8xf32, #tpu.memory_space<vmem>>, vector<16x8xf32>,
    return
  }
  func.func @transform_0(%arg0: i32) -> (i32, i32) {
    %c0_i32 = arith.constant 0 : i32
    %c0_i32_0 = arith.constant 0 : i32
    return %arg0, %c0_i32 : i32, i32
  }
  func.func @transform_1(%arg0: i32) -> (i32, i32) {
    %c0_i32 = arith.constant 0 : i32
    %c0_i32_0 = arith.constant 0 : i32
    %c0_i32_1 = arith.constant 0 : i32
    return %c0_i32, %c0_i32_0 : i32, i32
  }
  func.func @transform_2(%arg0: i32) -> (i32, i32) {
    %c0_i32 = arith.constant 0 : i32
    %c0_i32_0 = arith.constant 0 : i32
    %c0_i32_1 = arith.constant 0 : i32
    return %c0_i32, %c0_i32_0 : i32, i32
  }
  func.func @transform_3(%arg0: i32) -> (i32, i32) {
    %c0_i32 = arith.constant 0 : i32
    %c0_i32_0 = arith.constant 0 : i32
    %c0_i32_1 = arith.constant 0 : i32
    return %c0_i32, %c0_i32_0 : i32, i32
  }
  func.func @transform_4(%arg0: i32) -> (i32, i32) {
    %c0_i32 = arith.constant 0 : i32
    %c0_i32_0 = arith.constant 0 : i32
    return %c0_i32, %arg0 : i32, i32
  }
}

</mosaic_0001>

<llo_original>
// kernel: tpu_custom_call.1
$region0: #{tpu_custom_call.1}
  #allocation0 [shape = 'u32[]', space=smem, size = 0x4, offset = 0x4, fixed_abs, tag = 'smem constant byte address 0x4 - core index']
  #allocation1 [shape = 'u32[72,128]{1,0:T(1,128)}', space=vmem, size = 0x9000, scoped, tag = 'internal scratch']
  %s0 = inlined_call_operand.hbm [shape: f32[8,32], index: 0, kind: input, shape index: {}]
  %s1 = inlined_call_operand.hbm [shape: f32[1,32], index: 1, kind: input, shape index: {}]
  %s2 = inlined_call_operand.vmem [shape: f32[1,32], index: 2, kind: input, shape index: {}]
  %s3 = inlined_call_operand.hbm [shape: bf16[16,256], index: 3, kind: input, shape index: {}]
  %s4 = inlined_call_operand.vmem [shape: f32[16,8], index: 4, kind: output, shape index: {}]
  %s5 = sld [smem:[#allocation0]]
  $region38: #{tpu_custom_call.1} parent=0
    _
  %s7 = ssub.s32 1, %s5
  %s8 = scalar_select 0, %s7, %s5
  $region1: #{tpu_custom_call.1} parent=0
    #allocation2 [shape = 'u8[4096]{0}', space=vmem, size = 0x1000, scoped, tag = 'input window, operand 0, single buffered']
    #allocation3 [shape = 's32[1]{0}', space=sflag, size = 0x4, scoped, tag = 'scoped memory for tpu_custom_call.1']
    #allocation4 [shape = 'u8[512]{0}', space=vmem, size = 0x400, scoped, tag = 'input window, operand 1, single buffered']
    #allocation5 [shape = 's32[1]{0}', space=sflag, size = 0x4, scoped, tag = 'scoped memory for tpu_custom_call.1']
    #allocation6 [shape = 'u8[8192]{0}', space=vmem, size = 0x2000, scoped, tag = 'input window, operand 3, single buffered']
    %9 = vsyncpa [#allocation3], 0
    %10 = vsyncpa [#allocation5], 0
    // Predicated region
    $region2: #{tpu_custom_call.1} parent=1 // pred_check
      _
    $region3: #{tpu_custom_call.1} parent=1 // pred_check_branch
      %12 = sbr.rel (0) target = $region5
    $region4: #{tpu_custom_call.1} parent=1 // pred_region
      %14 = vsyncadd [#allocation3], 0
      %s16 = sshll.u32 %s0, 4
      %s17 = int_to_ptr.hbm [resolvable:$true] %s16
      %s18 = sshll.u32 [#allocation2], 4
      %s19 = int_to_ptr.vmem [resolvable:$true] %s18
      %21 = dma.hbm_to_vmem [thread:$0]  %s17, 128, %s19, [#allocation3]
    $region5: #{tpu_custom_call.1} parent=1 // pred_fallthru
      _
    // Predicated region
    $region6: #{tpu_custom_call.1} parent=1 // pred_check
      _
    $region7: #{tpu_custom_call.1} parent=1 // pred_check_branch
      %23 = sbr.rel (0) target = $region9
    $region8: #{tpu_custom_call.1} parent=1 // pred_region
      %25 = vsyncadd [#allocation5], 0
      %s27 = sshll.u32 %s1, 4
      %s28 = int_to_ptr.hbm [resolvable:$true] %s27
      %s29 = sshll.u32 [#allocation4], 4
      %s30 = int_to_ptr.vmem [resolvable:$true] %s29
      %32 = dma.hbm_to_vmem [thread:$0]  %s28, 16, %s30, [#allocation5]
    $region9: #{tpu_custom_call.1} parent=1 // pred_fallthru
      _
    // Predicated region
    $region10: #{tpu_custom_call.1} parent=1 // pred_check
      _
    $region11: #{tpu_custom_call.1} parent=1 // pred_check_branch
      %34 = sbr.rel (0) target = $region13
    $region12: #{tpu_custom_call.1} parent=1 // pred_region
      _
    $region13: #{tpu_custom_call.1} parent=1 // pred_fallthru
      _
    // Predicated region
    $region14: #{tpu_custom_call.1} parent=1 // pred_check
      _
    $region15: #{tpu_custom_call.1} parent=1 // pred_check_branch
      %36 = sbr.rel (0) target = $region17
    $region16: #{tpu_custom_call.1} parent=1 // pred_region
      %38 = vsyncadd [#allocation5], 0
      %s39 = sshll.u32 %s3, 4
      %s40 = int_to_ptr.hbm [resolvable:$true] %s39
      %s41 = sshll.u32 [#allocation6], 4
      %s42 = int_to_ptr.vmem [resolvable:$true] %s41
      %47 = dma.hbm_to_vmem [thread:$0]  %s40, 256, %s42, [#allocation5], 128, 128, 8
    $region17: #{tpu_custom_call.1} parent=1 // pred_fallthru
      _
    // Predicated region
    $region18: #{tpu_custom_call.1} parent=1 // pred_check
      _
    $region19: #{tpu_custom_call.1} parent=1 // pred_check_branch
      %49 = sbr.rel (0) target = $region21
    $region20: #{tpu_custom_call.1} parent=1 // pred_region
      %51 = dma.done [#allocation3], 128
    $region21: #{tpu_custom_call.1} parent=1 // pred_fallthru
      _
    // Predicated region
    $region22: #{tpu_custom_call.1} parent=1 // pred_check
      _
    $region23: #{tpu_custom_call.1} parent=1 // pred_check_branch
      %53 = sbr.rel (0) target = $region25
    $region24: #{tpu_custom_call.1} parent=1 // pred_region
      %55 = dma.done [#allocation5], 16
    $region25: #{tpu_custom_call.1} parent=1 // pred_fallthru
      _
    // Predicated region
    $region26: #{tpu_custom_call.1} parent=1 // pred_check
      _
    $region27: #{tpu_custom_call.1} parent=1 // pred_check_branch
      %57 = sbr.rel (0) target = $region29
    $region28: #{tpu_custom_call.1} parent=1 // pred_region
      %59 = dma.done [#allocation5], 256
    $region29: #{tpu_custom_call.1} parent=1 // pred_fallthru
      _
    %v60 = vld [vmem:[#allocation2] sm:$0xff]
    %vm61 = vcmask 261120
    %v62 = vsel %vm61, %v60, 0.0
    %63 = vadd.xlane.f32.xlu0 %v62
    %v64 = vpop.xlane.xlu0 %63
    %v65 = vrcp.pop 32.0
    %v66 = vmul.f32 32.0, %v65
    %v67 = vsub.f32 1.0, %v66
    %v68 = vmul.f32 %v65, %v67
    %v69 = vadd.f32 %v65, %v68
    %vm70 = vweird.f32 %v65
    %v71 = vsel %vm70, %v65, %v69
    %v72 = vmul.f32 %v64, %v71
    %v73 = vsub.f32 %v60, %v72
    %v74 = vmul.f32 %v73, %v73
    %v75 = vsel %vm61, %v74, 0.0
    %76 = vadd.xlane.f32.xlu0 %v75
    %v77 = vpop.xlane.xlu0 %76
    %v78 = vmul.f32 %v77, %v71
    %v79 = vadd.f32 %v78, 1e-05
    %v80 = vrsqrt.pop %v79
    %v81 = vmul.f32 %v80, %v79
    %v82 = vmul.f32 %v81, %v80
    %v83 = vmul.f32 0.5, %v82
    %v84 = vsub.f32 1.5, %v83
    %v85 = vmul.f32 %v80, %v84
    %vm86 = vweird.f32 %v79
    %vm87 = vweird.f32 %v80
    %vm88 = vmor %vm86, %vm87
    %v89 = vsel %vm88, %v80, %v85
    %v90 = vld [vmem:[#allocation4] sm:$0x1]
    %v92 = vperm.slane %v90, 0
    %v94 = vmul.f32 %v92, %v89
    %v95 = vmul.f32 %v73, %v94
    %v96 = vld [vmem:[%s2] sm:$0x1]
    %v98 = vperm.slane %v96, 0
    %v100 = vadd.f32 %v95, %v98
    %101 = vxpose.xlu0.b32.start [1/16] %v100, 128
    %102 = vxpose.xlu0.b32.cont [2/16] 0.0, 128
    %103 = vxpose.xlu0.b32.cont [3/16] 0.0, 128
    %104 = vxpose.xlu0.b32.cont [4/16] 0.0, 128
    %105 = vxpose.xlu0.b32.cont [5/16] 0.0, 128
    %106 = vxpose.xlu0.b32.cont [6/16] 0.0, 128
    %107 = vxpose.xlu0.b32.cont [7/16] 0.0, 128
    %108 = vxpose.xlu0.b32.cont [8/16] 0.0, 128
    %109 = vxpose.xlu0.b32.cont [9/16] 0.0, 128
    %110 = vxpose.xlu0.b32.cont [10/16] 0.0, 128
    %111 = vxpose.xlu0.b32.cont [11/16] 0.0, 128
    %112 = vxpose.xlu0.b32.cont [12/16] 0.0, 128
    %113 = vxpose.xlu0.b32.cont [13/16] 0.0, 128
    %114 = vxpose.xlu0.b32.cont [14/16] 0.0, 128
    %115 = vxpose.xlu0.b32.cont [15/16] 0.0, 128
    %116 = vxpose.xlu0.b32.end [16/16] 0.0, 128
    %v117 = vpop.trf.xlu0
    %v118 = vpop.trf.xlu0
    %v119 = vpop.trf.xlu0
    %v120 = vpop.trf.xlu0
    %v121 = vpop.trf.xlu0
    %v122 = vpop.trf.xlu0
    %v123 = vpop.trf.xlu0
    %v124 = vpop.trf.xlu0
    %v125 = vpop.trf.xlu0
    %v126 = vpop.trf.xlu0
    %v127 = vpop.trf.xlu0
    %v128 = vpop.trf.xlu0
    %v129 = vpop.trf.xlu0
    %v130 = vpop.trf.xlu0
    %v131 = vpop.trf.xlu0
    %v132 = vpop.trf.xlu0
    %v133 = vmul.f32 %v117, %v117
    %v134 = vmul.f32 %v118, %v118
    %v135 = vmul.f32 %v119, %v119
    %v136 = vmul.f32 %v120, %v120
    %v137 = vsub.f32 0.0, %v133
    %v138 = vsub.f32 0.0, %v134
    %v139 = vsub.f32 0.0, %v135
    %v140 = vsub.f32 0.0, %v136
    %v141 = vmul.f32 %v137, 1.442695
    %v142 = vpow.pop %v141
    %v143 = vmul.f32 %v138, 1.442695
    %v144 = vpow.pop %v143
    %v145 = vmul.f32 %v139, 1.442695
    %v146 = vpow.pop %v145
    %v147 = vmul.f32 %v140, 1.442695
    %v148 = vpow.pop %v147
    %v149 = vmul.f32 %v117, 2.0
    %v150 = vmul.f32 %v118, 2.0
    %v151 = vmul.f32 %v119, 2.0
    %v152 = vmul.f32 %v120, 2.0
    %v153 = vmul.f32 %v149, 1.442695
    %v154 = vpow.pop %v153
    %v155 = vmul.f32 %v150, 1.442695
    %v156 = vpow.pop %v155
    %v157 = vmul.f32 %v151, 1.442695
    %v158 = vpow.pop %v157
    %v159 = vmul.f32 %v152, 1.442695
    %v160 = vpow.pop %v159
    %v161 = vmul.f32 %v154, 0.36787945
    %v162 = vmul.f32 %v156, 0.36787945
    %v163 = vmul.f32 %v158, 0.36787945
    %v164 = vmul.f32 %v160, 0.36787945
    %v165 = vmul.f32 %v142, %v161
    %v166 = vmul.f32 %v144, %v162
    %v167 = vmul.f32 %v146, %v163
    %v168 = vmul.f32 %v148, %v164
    %v169 = vmul.f32 %v154, 0.049787067
    %v170 = vmul.f32 %v156, 0.049787067
    %v171 = vmul.f32 %v158, 0.049787067
    %v172 = vmul.f32 %v160, 0.049787067
    %v173 = vmul.f32 %v165, %v169
    %v174 = vmul.f32 %v166, %v170
    %v175 = vmul.f32 %v167, %v171
    %v176 = vmul.f32 %v168, %v172
    %v177 = vmul.f32 %v154, 0.006737947
    %v178 = vmul.f32 %v156, 0.006737947
    %v179 = vmul.f32 %v158, 0.006737947
    %v180 = vmul.f32 %v160, 0.006737947
    %v181 = vmul.f32 %v173, %v177
    %v182 = vmul.f32 %v174, %v178
    %v183 = vmul.f32 %v175, %v179
    %v184 = vmul.f32 %v176, %v180
    %v185 = vmul.f32 %v154, 0.000911882
    %v186 = vmul.f32 %v156, 0.000911882
    %v187 = vmul.f32 %v158, 0.000911882
    %v188 = vmul.f32 %v160, 0.000911882
    %v189 = vmul.f32 %v181, %v185
    %v190 = vmul.f32 %v182, %v186
    %v191 = vmul.f32 %v183, %v187
    %v192 = vmul.f32 %v184, %v188
    %v193 = vmul.f32 %v154, 0.0001234098
    %v194 = vmul.f32 %v156, 0.0001234098
    %v195 = vmul.f32 %v158, 0.0001234098
    %v196 = vmul.f32 %v160, 0.0001234098
    %v197 = vmul.f32 %v189, %v193
    %v198 = vmul.f32 %v190, %v194
    %v199 = vmul.f32 %v191, %v195
    %v200 = vmul.f32 %v192, %v196
    %v201 = vmul.f32 %v154, 1.67017e-05
    %v202 = vmul.f32 %v156, 1.67017e-05
    %v203 = vmul.f32 %v158, 1.67017e-05
    %v204 = vmul.f32 %v160, 1.67017e-05
    %v205 = vmul.f32 %v197, %v201
    %v206 = vmul.f32 %v198, %v202
    %v207 = vmul.f32 %v199, %v203
    %v208 = vmul.f32 %v200, %v204
    %v209 = vmul.f32 %v154, 2.2603294e-06
    %v210 = vmul.f32 %v156, 2.2603294e-06
    %v211 = vmul.f32 %v158, 2.2603294e-06
    %v212 = vmul.f32 %v160, 2.2603294e-06
    %v213 = vmul.f32 %v205, %v209
    %v214 = vmul.f32 %v206, %v210
    %v215 = vmul.f32 %v207, %v211
    %v216 = vmul.f32 %v208, %v212
    %v217 = vpack.c.bf16 %v144, %v142
    %v218 = vpack.c.bf16 %v148, %v146
    %v219 = vpack.c.bf16 %v166, %v165
    %v220 = vpack.c.bf16 %v168, %v167
    %v221 = vpack.c.bf16 %v174, %v173
    %v222 = vpack.c.bf16 %v176, %v175
    %v223 = vpack.c.bf16 %v182, %v181
    %v224 = vpack.c.bf16 %v184, %v183
    %v225 = vpack.c.bf16 %v190, %v189
    %v226 = vpack.c.bf16 %v192, %v191
    %v227 = vpack.c.bf16 %v198, %v197
    %v228 = vpack.c.bf16 %v200, %v199
    %v229 = vpack.c.bf16 %v206, %v205
    %v230 = vpack.c.bf16 %v208, %v207
    %v231 = vpack.c.bf16 %v214, %v213
    %v232 = vpack.c.bf16 %v216, %v215
    %v233 = vld [vmem:[#allocation6] sm:$0xff]
    %v234 = vld [vmem:[#allocation6 + $0x8] sm:$0xff]
    %v237 = vunpack.c.l.b16 %v233
    %v238 = vunpack.c.h.b16 %v233
    %v239 = vunpack.c.l.b16 %v234
    %v240 = vunpack.c.h.b16 %v234
    %v241 = vpack.c.b16 %v239, %v237
    %v242 = vpack.c.b16 %v240, %v238
    %245 = vmatpush.bf16.msra.mxu0 %v224
    %246 = vmatpush.bf16.msra.mxu0 %v223
    %247 = vmatpush.bf16.msra.mxu0 %v222
    %248 = vmatpush.bf16.msra.mxu0 %v221
    %249 = vmatpush.bf16.msra.mxu0 %v220
    %250 = vmatpush.bf16.msra.mxu0 %v219
    %251 = vmatpush.bf16.msra.mxu0 %v218
    %252 = vmatpush.bf16.msra.mxu0 %v217
    %253 = vmatmul.bf16.gmra.mxu0 %v241
    %v254 = vpop.f32.mrf.mxu0
    %v255 = vadd.f32 0.0, %v254
    %v256 = vpop.f32.mrf.mxu0
    %v257 = vadd.f32 0.0, %v256
    %258 = vdwg.mxu0
    %259 = vmatpush.bf16.msra.mxu0 %v232
    %260 = vmatpush.bf16.msra.mxu0 %v231
    %261 = vmatpush.bf16.msra.mxu0 %v230
    %262 = vmatpush.bf16.msra.mxu0 %v229
    %263 = vmatpush.bf16.msra.mxu0 %v228
    %264 = vmatpush.bf16.msra.mxu0 %v227
    %265 = vmatpush.bf16.msra.mxu0 %v226
    %266 = vmatpush.bf16.msra.mxu0 %v225
    %267 = vmatmul.bf16.gmra.mxu0 %v242
    %v268 = vpop.f32.mrf.mxu0
    %v269 = vadd.f32 %v255, %v268
    %v270 = vpop.f32.mrf.mxu0
    %v271 = vadd.f32 %v257, %v270
    %272 = vdwg.mxu0
    %vm273 = vcmask 64512
    %274 = vst.msk [vmem:[%s4] sm:$0xff] %vm273, %v269
    %275 = vst.msk [vmem:[%s4 + $0x8] sm:$0xff] %vm273, %v271
    // Predicated region
    $region30: #{tpu_custom_call.1} parent=1 // pred_check
      _
    $region31: #{tpu_custom_call.1} parent=1 // pred_check_branch
      %277 = sbr.rel (0) target = $region33
    $region32: #{tpu_custom_call.1} parent=1 // pred_region
      _
    $region33: #{tpu_custom_call.1} parent=1 // pred_fallthru
      _
    // Predicated region
    $region34: #{tpu_custom_call.1} parent=1 // pred_check
      _
    $region35: #{tpu_custom_call.1} parent=1 // pred_check_branch
      %279 = sbr.rel (0) target = $region37
    $region36: #{tpu_custom_call.1} parent=1 // pred_region
      _
    $region37: #{tpu_custom_call.1} parent=1 // pred_fallthru
      _
    %280 = vsyncpa [#allocation3], 1
    %281 = vsyncpa [#allocation5], 1

</llo_original>
